<compile_context>
chip_gen: v7x
topology: tpu7x:2x2x1
jax: 0.10.0
libtpu: 0.0.40
codegen_flags: <defaults>
</compile_context>

<pallas_src>
import functools

import numpy as np
import jax
import jax.numpy as jnp
from jax.experimental import pallas as pl
from jax.experimental.pallas import tpu as pltpu


def _round_up(x: int, m: int) -> int:
    return ((x + m - 1) // m) * m


def _vmem_capacity_bytes() -> int:
    try:
        return int(pltpu.get_tpu_info().vmem_capacity_bytes)
    except Exception:
        return 64 * 1024 * 1024        # conservative: v7x per-TensorCore VMEM


def vq_kernel(z_ref, cb_ref, cbsqh_ref, *out_refs,
              m_valid, gather_in_kernel, mm_dtype):
    """One TM-row tile of VQ against the resident (Kp, Dp) codebook."""
    if gather_in_kernel:
        zq_ref, ind_ref, sse_ref = out_refs
    else:
        ind_ref, sse_ref = out_refs

    i = pl.program_id(0)
    tm = z_ref.shape[0]
    kp = cb_ref.shape[0]

    z = z_ref[...]                        # (TM, Dp)  native dtype
    cb = cb_ref[...]                      # (Kp, Dp)  native dtype (resident)
    cb_sq_half = cbsqh_ref[...]           # (1, Kp)   f32: 0.5*||e_k||^2 (pad=+huge)

    # MXU pass 1: cross[m, k] = z_m . e_k  (optionally bf16 inputs, f32 acc).
    z_mm = z if mm_dtype is None else z.astype(mm_dtype)
    cb_mm = cb if mm_dtype is None else cb.astype(mm_dtype)
    cross = jax.lax.dot_general(
        z_mm, cb_mm, (((1,), (1,)), ((), ())),
        preferred_element_type=jnp.float32)                      # (TM, Kp)

    # Argmin-equivalent surrogate: d = 0.5*||e||^2 - z.e
    # (= 0.5*||z - e||^2 - 0.5*||z||^2; the per-row term is argmin-invariant).
    d = cb_sq_half - cross                                       # (TM, Kp) f32

    # First-occurrence argmin over codes (matches torch.min tie-break).
    min_d = jnp.min(d, axis=-1, keepdims=True)                   # (TM, 1)
    iota_k = jax.lax.broadcasted_iota(jnp.int32, d.shape, 1)     # (TM, Kp)
    ind_col = jnp.min(jnp.where(d == min_d, iota_k, kp),
                      axis=-1, keepdims=True)                    # (TM, 1) i32
    onehot = iota_k == ind_col                                   # (TM, Kp) bool

    # Lane-dense index writeback: extract per-row index with a tiny trans-B
    # matmul so the TM indices land in lanes (unmasked full-vreg stores).
    iota_row = jax.lax.broadcasted_iota(
        jnp.int32, (1, kp), 1).astype(jnp.float32)               # (1, Kp)
    ind_row = jax.lax.dot_general(
        iota_row, onehot.astype(jnp.float32), (((1,), (1,)), ((), ())),
        preferred_element_type=jnp.float32)                      # (1, TM)
    ind_ref[...] = (ind_row + 0.5).astype(jnp.int32).reshape(1, 1, tm)

    # Mask padded rows out of the SSE partial.
    row_ids = i * tm + jax.lax.broadcasted_iota(jnp.int32, (tm, 1), 0)
    valid = (row_ids < m_valid).astype(jnp.float32)              # (TM, 1)

    if gather_in_kernel:
        # MXU pass 2: z_q = one_hot @ codebook (exact codebook rows, f32 acc).
        zq = jnp.dot(onehot.astype(cb.dtype), cb,
                     preferred_element_type=jnp.float32)         # (TM, Dp) f32
        zq_ref[...] = zq.astype(zq_ref.dtype)
        diff = (zq - z.astype(jnp.float32)) * valid
        sse = jnp.sum(jnp.sum(diff * diff, axis=-1, keepdims=True),
                      axis=0, keepdims=True)                     # (1, 1)
    else:
        # ||z - e*||^2 = ||z||^2 + 2*min_d (no (TM, Dp) diff temporaries).
        z32 = z.astype(jnp.float32)
        z_sq = jnp.sum(z32 * z32, axis=-1, keepdims=True)        # (TM, 1)
        dist = jnp.maximum(z_sq + 2.0 * min_d, 0.0) * valid
        sse = jnp.sum(dist, axis=0, keepdims=True)               # (1, 1)

    sse_ref[...] = jnp.broadcast_to(sse, sse_ref.shape)          # (1, 1, 128)


def vq_forward(z, codebook, *, tile_m=512, gather_in_kernel=None,
               distance_matmul_dtype=None):
    """Pallas VQ forward. Returns (z_q_straight_through, ind, vq+commit loss).

    distance_matmul_dtype: set to jnp.bfloat16 for f32 inputs to run the
    distance matmul at full MXU rate (argmin-invariant up to rounding).
    """
    orig_shape = z.shape
    D = int(orig_shape[-1])
    M = int(np.prod(orig_shape[:-1]))
    K = int(codebook.shape[0])
    assert K < (1 << 24), "f32 one-hot index extraction requires K < 2**24"

    # Pad to lane/MXU-friendly sizes (256-wide K for the v6e/v7x MXU).
    Dp = _round_up(D, 128)
    Kp = _round_up(K, 256) if K > 128 else _round_up(K, 128)

    if gather_in_kernel is None:
        # Small codebook: the second MXU pass is cheap and bit-exact in-kernel.
        # Large codebook: return indices only; gather z_q in the wrapper.
        gather_in_kernel = Kp <= 1024

    z_bytes = z.dtype.itemsize
    cb_bytes = codebook.dtype.itemsize

    def _vmem_est(tm):
        return (2 * tm * Dp * z_bytes                                  # z in (2-buf)
                + (2 * tm * Dp * z_bytes if gather_in_kernel else 0)   # z_q out
                + 1 * Kp * Dp * cb_bytes                               # codebook (1-buf)
                + Kp * 4                                               # 0.5*||e||^2
                + 2 * (tm + 128) * 4                                   # ind / sse
                + 4 * tm * Kp * 4                                      # dist/one-hot temps
                + (3 if gather_in_kernel else 2) * tm * Dp * 4)        # f32 temps

    vmem_cap = _vmem_capacity_bytes()
    budget = vmem_cap - max(8 * 1024 * 1024, vmem_cap // 8)   # Mosaic scratch headroom

    TM = max(8, min(int(tile_m), _round_up(M, 8)))
    while TM > 8 and _vmem_est(TM) > budget:
        TM = max(8, _round_up(TM // 2, 8))
    # TODO(synk): add K-tiling (inner "arbitrary" grid axis over code blocks with
    # running min/argmin in VMEM scratch) for codebooks too large to sit resident
    # in VMEM even at TM=8 (many-thousand-entry codebooks on v7x).

    Mp = _round_up(M, TM)
    if Mp // TM == 1 and M > 8:
        TM = _round_up((M + 1) // 2, 8)   # ensure G >= 2 so both v7x TCs get work
        Mp = _round_up(M, TM)
    G = Mp // TM

    zf = z.reshape(M, D)
    z_pad = zf if (Mp == M and Dp == D) else jnp.pad(zf, ((0, Mp - M), (0, Dp - D)))
    cb_pad = (codebook if (Kp == K and Dp == D)
              else jnp.pad(codebook, ((0, Kp - K), (0, Dp - D))))

    # Hoisted 0.5*||e_k||^2 (factor of 2 folded in); padded codes get a huge
    # sentinel so they can never win the argmin.
    cb_sq_half = 0.5 * jnp.sum(codebook.astype(jnp.float32) ** 2, axis=-1)
    cb_sq_half = jnp.pad(cb_sq_half, (0, Kp - K),
                         constant_values=1e30).reshape(1, Kp)

    flops = 2 * Mp * Kp * Dp + 2 * Mp * Kp
    if gather_in_kernel:
        flops += 2 * Mp * Kp * Dp
    cost = pl.CostEstimate(
        flops=int(flops), transcendentals=0,
        bytes_accessed=int((2 if gather_in_kernel else 1) * Mp * Dp * z_bytes
                           + Kp * Dp * cb_bytes + Kp * 4 + Mp * 4 + G * 128 * 4))

    vmem_limit = int(min(max(int(1.25 * _vmem_est(TM)), 16 * 1024 * 1024), budget))

    in_specs = [
        pl.BlockSpec((TM, Dp), lambda i: (i, 0)),                 # z tile (streamed)
        pl.BlockSpec((Kp, Dp), lambda i: (0, 0),
                     pipeline_mode=pl.Buffered(1)),               # codebook (resident)
        pl.BlockSpec((1, Kp), lambda i: (0, 0),
                     pipeline_mode=pl.Buffered(1)),               # 0.5*||e||^2 (resident)
    ]
    ind_shape = jax.ShapeDtypeStruct((G, 1, TM), jnp.int32)
    sse_shape = jax.ShapeDtypeStruct((G, 1, 128), jnp.float32)
    ind_spec = pl.BlockSpec((1, 1, TM), lambda i: (i, 0, 0))
    sse_spec = pl.BlockSpec((1, 1, 128), lambda i: (i, 0, 0))
    if gather_in_kernel:
        out_shape = (jax.ShapeDtypeStruct((Mp, Dp), z.dtype), ind_shape, sse_shape)
        out_specs = (pl.BlockSpec((TM, Dp), lambda i: (i, 0)), ind_spec, sse_spec)
    else:
        out_shape = (ind_shape, sse_shape)
        out_specs = (ind_spec, sse_spec)

    kernel = functools.partial(vq_kernel, m_valid=M,
                               gather_in_kernel=gather_in_kernel,
                               mm_dtype=distance_matmul_dtype)

    outs = pl.pallas_call(
        kernel,
        out_shape=out_shape,
        grid=(G,),
        in_specs=in_specs,
        out_specs=out_specs,
        compiler_params=pltpu.CompilerParams(
            dimension_semantics=("parallel",),
            vmem_limit_bytes=vmem_limit,
        ),
        cost_estimate=cost,
    )(z_pad, cb_pad, cb_sq_half)

    if gather_in_kernel:
        zq_pad, ind_out, sse_out = outs
        zq_flat = zq_pad if (Mp == M and Dp == D) else zq_pad[:M, :D]
        ind_flat = ind_out.reshape(-1)[:M]
        zq = zq_flat.reshape(orig_shape)
    else:
        ind_out, sse_out = outs
        ind_flat = ind_out.reshape(-1)[:M]
        zq = jnp.take(codebook, ind_flat, axis=0).astype(z.dtype).reshape(orig_shape)

    ind = ind_flat.reshape(orig_shape[:-1])
    sse = jnp.sum(sse_out[:, 0, 0])
    # vq_loss + commitment_loss = 2 * mse(z_q, z)  (forward value).
    loss = 2.0 * sse / jnp.float32(M * D)
    # TODO(synk): no custom_vjp — only forward values / straight-through output
    # match the PyTorch module; gradients w.r.t. z / codebook do not flow
    # through the pallas_call the way autograd flows through the reference.
    z_q_st = z + jax.lax.stop_gradient(zq - z)
    return z_q_st, ind, loss


def vq_reference(z, codebook):
    """Pure-JAX reference mirroring the PyTorch forward."""
    d = jnp.sum((z[..., None, :] - codebook) ** 2.0, axis=-1)
    ind = jnp.argmin(d, axis=-1).astype(jnp.int32)
    z_q = codebook[ind]
    loss = 2.0 * jnp.mean((z_q - z) ** 2)
    return z + jax.lax.stop_gradient(z_q - z), ind, loss


if __name__ == "__main__":
    # Small, module-consistent shapes: batch=2, seq=8, hidden=32, k=64.
    B, N, D, K = 2, 8, 32, 64
    key = jax.random.PRNGKey(0)
    kz, kc = jax.random.split(key)
    z = jax.random.normal(kz, (B, N, D), dtype=jnp.float32)
    # nn.Embedding(k, hidden).weight.data.uniform_(-1/k, 1/k)
    codebook = jax.random.uniform(kc, (K, D), dtype=jnp.float32,
                                  minval=-1.0 / K, maxval=1.0 / K)

    z_q_ref, ind_ref, loss_ref = vq_reference(z, codebook)

    # Path 1: small-K path (in-kernel one-hot gather, SSE from the exact diff).
    z_q1, ind1, loss1 = vq_forward(z, codebook)
    jax.block_until_ready((z_q1, ind1, loss1))
    np.testing.assert_array_equal(np.asarray(ind1), np.asarray(ind_ref))
    np.testing.assert_allclose(np.asarray(z_q1), np.asarray(z_q_ref),
                               rtol=1e-5, atol=1e-5)
    np.testing.assert_allclose(float(loss1), float(loss_ref),
                               rtol=1e-5, atol=1e-6)

    # Path 2: large-K path (kernel emits indices + SSE only; z_q gathered in the
    # wrapper), forced on the same small problem to validate it end to end.
    z_q2, ind2, loss2 = vq_forward(z, codebook, gather_in_kernel=False)
    jax.block_until_ready((z_q2, ind2, loss2))
    np.testing.assert_array_equal(np.asarray(ind2), np.asarray(ind_ref))
    np.testing.assert_allclose(np.asarray(z_q2), np.asarray(z_q_ref),
                               rtol=1e-5, atol=1e-5)
    np.testing.assert_allclose(float(loss2), float(loss_ref),
                               rtol=1e-5, atol=1e-6)

    print("KERNEL_OK")
</pallas_src>

<mosaic_0001>
module attributes {stable_mosaic.version = 11 : i64} {
  func.func @vq_kernel(%arg0: i32, %arg1: memref<8x128xf32, #tpu.memory_space<vmem>>, %arg2: memref<128x128xf32, #tpu.memory_space<vmem>>, %arg3: memref<1x128xf32, #tpu.memory_space<vmem>>, %arg4: memref<8x128xf32, #tpu.memory_space<vmem>>, %arg5: memref<1x1x8xi32, #tpu.memory_space<vmem>>, %arg6: memref<1x1x128xf32, #tpu.memory_space<vmem>>) attributes {dimension_semantics = [#tpu.dimension_semantics<parallel>], iteration_bounds = array<i64: 2>, scalar_prefetch = 0 : i64, scratch_operands = 0 : i64, tpu.core_type = #tpu.core_type<tc>, window_params = [{transform_indices = @transform_0, window_bounds = array<i64: 8, 128>}, {pipeline_mode = #tpu.pipeline_mode<synchronous>, transform_indices = @transform_1, window_bounds = array<i64: 128, 128>}, {pipeline_mode = #tpu.pipeline_mode<synchronous>, transform_indices = @transform_2, window_bounds = array<i64: 1, 128>}, {transform_indices = @transform_3, window_bounds = array<i64: 8, 128>}, {transform_indices = @transform_4, window_bounds = array<i64: 1, 1, 8>}, {transform_indices = @transform_5, window_bounds = array<i64: 1, 1, 128>}]} {
    %c0 = arith.constant 0 : index
    %c0_0 = arith.constant 0 : index
    %0 = vector.load %arg1[%c0, %c0_0] : memref<8x128xf32, #tpu.memory_space<vmem>>, vector<8x128xf32>
    %c0_1 = arith.constant 0 : index
    %c0_2 = arith.constant 0 : index
    %1 = vector.load %arg2[%c0_1, %c0_2] : memref<128x128xf32, #tpu.memory_space<vmem>>, vector<128x128xf32>
    %c0_3 = arith.constant 0 : index
    %c0_4 = arith.constant 0 : index
    %2 = vector.load %arg3[%c0_3, %c0_4] : memref<1x128xf32, #tpu.memory_space<vmem>>, vector<1x128xf32>
    %cst = arith.constant dense<0.000000e+00> : vector<8x128xf32>
    %3 = tpu.matmul %0, %1, %cst {dimension_numbers = #tpu.dot_dimension_numbers<[1], [1], [0], [0], [0, 0, 1, 0], [], []>} : vector<8x128xf32>, vector<128x128xf32>, vector<8x128xf32> -> vector<8x128xf32>
    %4 = vector.broadcast %2 : vector<1x128xf32> to vector<8x128xf32>
    %5 = arith.subf %4, %3 : vector<8x128xf32>
    %cst_5 = arith.constant dense<0x7F800000> : vector<8xf32>
    %6 = vector.multi_reduction <minimumf>, %5, %cst_5 [1] : vector<8x128xf32> to vector<8xf32>
    %7 = vector.shape_cast %6 : vector<8xf32> to vector<8x1xf32>
    %8 = tpu.iota {dimensions = array<i32: 1>} : vector<8x128xi32>
    %9 = vector.broadcast %7 : vector<8x1xf32> to vector<8x128xf32>
    %10 = arith.cmpf oeq, %5, %9 : vector<8x128xf32>
    %c128_i32 = arith.constant 128 : i32
    %11 = vector.broadcast %c128_i32 : i32 to vector<8x128xi32>
    %12 = arith.select %10, %8, %11 : vector<8x128xi1>, vector<8x128xi32>
    %cst_6 = arith.constant dense<2147483647> : vector<8xi32>
    %13 = vector.multi_reduction <minsi>, %12, %cst_6 [1] : vector<8x128xi32> to vector<8xi32>
    %14 = vector.shape_cast %13 : vector<8xi32> to vector<8x1xi32>
    %15 = vector.broadcast %14 : vector<8x1xi32> to vector<8x128xi32>
    %16 = arith.cmpi eq, %8, %15 : vector<8x128xi32>
    %17 = tpu.iota {dimensions = array<i32: 1>} : vector<1x128xi32>
    %18 = arith.sitofp %17 : vector<1x128xi32> to vector<1x128xf32>
    %19 = arith.extui %16 : vector<8x128xi1> to vector<8x128xi32>
    %20 = arith.sitofp %19 : vector<8x128xi32> to vector<8x128xf32>
    %cst_7 = arith.constant dense<0.000000e+00> : vector<1x8xf32>
    %21 = tpu.matmul %18, %20, %cst_7 {dimension_numbers = #tpu.dot_dimension_numbers<[1], [1], [0], [0], [0, 0, 1, 0], [], []>} : vector<1x128xf32>, vector<8x128xf32>, vector<1x8xf32> -> vector<1x8xf32>
    %cst_8 = arith.constant 5.000000e-01 : f32
    %22 = vector.broadcast %cst_8 : f32 to vector<1x8xf32>
    %23 = arith.addf %21, %22 : vector<1x8xf32>
    %24 = arith.fptosi %23 : vector<1x8xf32> to vector<1x8xi32>
    %25 = vector.shape_cast %24 : vector<1x8xi32> to vector<1x1x8xi32>
    %c0_9 = arith.constant 0 : index
    %c0_10 = arith.constant 0 : index
    %c0_11 = arith.constant 0 : index
    %26 = vector.load %arg5[%c0_9, %c0_10, %c0_11] : memref<1x1x8xi32, #tpu.memory_space<vmem>>, vector<1x1x8xi32>
    tpu.vector_store %arg5[%c0_9, %c0_10, %c0_11], %25 {strides = array<i32>} : memref<1x1x8xi32, #tpu.memory_space<vmem>>, vector<1x1x8xi32>,
    %c8_i32 = arith.constant 8 : i32
    %27 = arith.muli %arg0, %c8_i32 : i32
    %28 = tpu.iota {dimensions = array<i32: 0>} : vector<8x1xi32>
    %29 = vector.broadcast %27 : i32 to vector<8x1xi32>
    %30 = arith.addi %29, %28 : vector<8x1xi32>
    %c16_i32 = arith.constant 16 : i32
    %31 = vector.broadcast %c16_i32 : i32 to vector<8x1xi32>
    %32 = arith.cmpi slt, %30, %31 : vector<8x1xi32>
    %33 = arith.extui %32 : vector<8x1xi1> to vector<8x1xi32>
    %34 = arith.sitofp %33 : vector<8x1xi32> to vector<8x1xf32>
    %35 = arith.extui %16 : vector<8x128xi1> to vector<8x128xi32>
    %36 = arith.sitofp %35 : vector<8x128xi32> to vector<8x128xf32>
    %cst_12 = arith.constant dense<0.000000e+00> : vector<8x128xf32>
    %37 = tpu.matmul %36, %1, %cst_12 {dimension_numbers = #tpu.dot_dimension_numbers<[1], [0], [0], [1], [0, 0, 1, 1], [], []>} : vector<8x128xf32>, vector<128x128xf32>, vector<8x128xf32> -> vector<8x128xf32>
    %c0_13 = arith.constant 0 : index
    %c0_14 = arith.constant 0 : index
    %38 = vector.load %arg4[%c0_13, %c0_14] : memref<8x128xf32, #tpu.memory_space<vmem>>, vector<8x128xf32>
    tpu.vector_store %arg4[%c0_13, %c0_14], %37 {strides = array<i32>} : memref<8x128xf32, #tpu.memory_space<vmem>>, vector<8x128xf32>,
    %39 = arith.subf %37, %0 : vector<8x128xf32>
    %40 = vector.broadcast %34 : vector<8x1xf32> to vector<8x128xf32>
    %41 = arith.mulf %39, %40 : vector<8x128xf32>
    %42 = arith.mulf %41, %41 : vector<8x128xf32>
    %cst_15 = arith.constant dense<0.000000e+00> : vector<8xf32>
    %43 = vector.multi_reduction <add>, %42, %cst_15 [1] : vector<8x128xf32> to vector<8xf32>
    %44 = vector.shape_cast %43 : vector<8xf32> to vector<8x1xf32>
    %cst_16 = arith.constant dense<0.000000e+00> : vector<1xf32>
    %45 = vector.multi_reduction <add>, %44, %cst_16 [0] : vector<8x1xf32> to vector<1xf32>
    %46 = vector.shape_cast %45 : vector<1xf32> to vector<1x1xf32>
    %47 = vector.shape_cast %46 : vector<1x1xf32> to vector<1x1x1xf32>
    %48 = vector.broadcast %47 : vector<1x1x1xf32> to vector<1x1x128xf32>
    %c0_17 = arith.constant 0 : index
    %c0_18 = arith.constant 0 : index
    %c0_19 = arith.constant 0 : index
    %49 = vector.load %arg6[%c0_17, %c0_18, %c0_19] : memref<1x1x128xf32, #tpu.memory_space<vmem>>, vector<1x1x128xf32>
    tpu.vector_store %arg6[%c0_17, %c0_18, %c0_19], %48 {strides = array<i32>} : memref<1x1x128xf32, #tpu.memory_space<vmem>>, vector<1x1x128xf32>,
    return
  }
  func.func @transform_0(%arg0: i32) -> (i32, i32) {
    %c0_i32 = arith.constant 0 : i32
    %c0_i32_0 = arith.constant 0 : i32
    return %arg0, %c0_i32 : i32, i32
  }
  func.func @transform_1(%arg0: i32) -> (i32, i32) {
    %c0_i32 = arith.constant 0 : i32
    %c0_i32_0 = arith.constant 0 : i32
    %c0_i32_1 = arith.constant 0 : i32
    return %c0_i32, %c0_i32_0 : i32, i32
  }
  func.func @transform_2(%arg0: i32) -> (i32, i32) {
    %c0_i32 = arith.constant 0 : i32
    %c0_i32_0 = arith.constant 0 : i32
    %c0_i32_1 = arith.constant 0 : i32
    return %c0_i32, %c0_i32_0 : i32, i32
  }
  func.func @transform_3(%arg0: i32) -> (i32, i32) {
    %c0_i32 = arith.constant 0 : i32
    %c0_i32_0 = arith.constant 0 : i32
    return %arg0, %c0_i32 : i32, i32
  }
  func.func @transform_4(%arg0: i32) -> (i32, i32, i32) {
    %c0_i32 = arith.constant 0 : i32
    %c0_i32_0 = arith.constant 0 : i32
    %c0_i32_1 = arith.constant 0 : i32
    return %arg0, %c0_i32, %c0_i32_0 : i32, i32, i32
  }
  func.func @transform_5(%arg0: i32) -> (i32, i32, i32) {
    %c0_i32 = arith.constant 0 : i32
    %c0_i32_0 = arith.constant 0 : i32
    %c0_i32_1 = arith.constant 0 : i32
    return %arg0, %c0_i32, %c0_i32_0 : i32, i32, i32
  }
}

</mosaic_0001>

<llo_original>
// kernel: tpu_custom_call.1
$region0: #{tpu_custom_call.1}
  #allocation0 [shape = 'u32[]', space=smem, size = 0x4, offset = 0x4, fixed_abs, tag = 'smem constant byte address 0x4 - core index']
  #allocation1 [shape = 'u32[144,128]{1,0:T(1,128)}', space=vmem, size = 0x12000, scoped, tag = 'internal scratch']
  %s0 = inlined_call_operand.hbm [shape: f32[16,128], index: 0, kind: input, shape index: {}]
  %s1 = inlined_call_operand.hbm [shape: f32[128,128], index: 1, kind: input, shape index: {}]
  %s2 = inlined_call_operand.vmem [shape: f32[1,128], index: 2, kind: input, shape index: {}]
  %s3 = inlined_call_operand.hbm [shape: f32[16,128], index: 3, kind: output, shape index: {0}]
  %s4 = inlined_call_operand.hbm [shape: s32[2,1,8], index: 4, kind: output, shape index: {1}]
  %s5 = inlined_call_operand.hbm [shape: f32[2,1,128], index: 5, kind: output, shape index: {2}]
  %6 = xla_tuple %s3, %s4, %s5
  %s7 = sld [smem:[#allocation0]]
  $region69: #{tpu_custom_call.1} parent=0
    _
  %s9 = ssub.s32 1, %s7
  %s10 = scalar_select 0, %s9, %s7
  $region1: #{tpu_custom_call.1} parent=0
    #allocation2 [shape = 'u8[8192]{0}', space=vmem, size = 0x2000, scoped, tag = 'input window, operand 0']
    #allocation3 [shape = 's32[2]{0}', space=sflag, size = 0x8, scoped, tag = 'scoped memory for tpu_custom_call.1']
    #allocation4 [shape = 's32[2]{0}', space=sflag, size = 0x8, scoped, tag = 'scoped memory for tpu_custom_call.1']
    #allocation5 [shape = 'u8[65536]{0}', space=vmem, size = 0x10000, scoped, tag = 'input window, operand 1, single buffered']
    #allocation6 [shape = 's32[1]{0}', space=sflag, size = 0x4, scoped, tag = 'scoped memory for tpu_custom_call.1']
    #allocation7 [shape = 'u8[8192]{0}', space=vmem, size = 0x2000, scoped, tag = 'output window, operand 0']
    #allocation8 [shape = 'u8[1024]{0}', space=vmem, size = 0x400, scoped, tag = 'output window, operand 1']
    #allocation9 [shape = 's32[2]{0}', space=sflag, size = 0x8, scoped, tag = 'scoped memory for tpu_custom_call.1']
    #allocation10 [shape = 'u8[1024]{0}', space=vmem, size = 0x400, scoped, tag = 'output window, operand 2']
    %11 = vsyncpa [#allocation3], 0
    %s12 = scalar_lea.sflag [#allocation3], 1
    %13 = vsyncpa %s12, 0
    %14 = vsyncpa [#allocation6], 0
    %15 = vsyncpa [#allocation4], 0
    %s16 = scalar_lea.sflag [#allocation4], 1
    %17 = vsyncpa %s16, 0
    %18 = vsyncpa [#allocation9], 0
    %s19 = scalar_lea.sflag [#allocation9], 1
    %20 = vsyncpa %s19, 0
    loop: start=0, step=1, limit=4
    $region2: #{tpu_custom_call.1} parent=1 // loop_pre_header
      _
    $region3: #{tpu_custom_call.1} parent=1 // loop_header
      %s22 = sphi 0, %s26
      %p23 = scmp.ge.s32.totalorder %s22, 4
      %s32 = sphi 0, %s34
      %s35 = sphi 0, %s32
      %s36 = sphi 0, %s35
      %s52 = sphi 0, %s36
      %s56 = sphi 0, %s56
      %s58 = sphi 0, %s56
      %s59 = sphi 0, %s58
      %s73 = sphi 0, %s59
      %s77 = sphi 0, %s77
      %s79 = sphi 0, %s77
      %s80 = sphi 0, %s79
      %s94 = sphi 0, %s80
      %s100 = sphi 0, %s102
      %s103 = sphi 0, %s100
      %s104 = sphi 0, %s103
      %s120 = sphi 0, %s104
      %s126 = sphi 0, %s128
      %s129 = sphi 0, %s126
      %s130 = sphi 0, %s129
      %s146 = sphi 0, %s130
      %s152 = sphi 0, %s154
      %s155 = sphi 0, %s152
      %s156 = sphi 0, %s155
      %s172 = sphi 0, %s156
    $region4: #{tpu_custom_call.1} parent=1 // loop_header_branch
      %25 = sbr.rel (%p23) target = $region8
    $region5: #{tpu_custom_call.1} parent=1 // loop_body
      %s27 = ssub.s32 %s22, 1
      %s28 = ssub.s32 %s22, 2
      %s29 = sadd.s32 %s22, 1
      %s30 = ssub.s32 %s22, %s29
      %p31 = scmp.eq.s32.totalorder %s30, 0
      %s33 = sadd.s32 %s32, 1
      %s34 = scalar_select %p31, %s32, %s33
      %p37 = pneg %p31
      %p38 = scmp.eq.s32.totalorder %s22, 1
      %p39 = por %p37, %p38
      %p40 = scmp.ne.s32.totalorder %s32, %s35
      %p41 = scmp.eq.s32.totalorder %s22, 0
      %p42 = por %p40, %p41
      %p43 = scmp.ne.s32.totalorder %s32, %s35
      %p44 = scmp.eq.s32.totalorder %s27, 1
      %p45 = por %p43, %p44
      %p46 = scmp.ne.s32.totalorder %s35, %s36
      %p47 = scmp.eq.s32.totalorder %s27, 0
      %p48 = por %p46, %p47
      %p49 = scmp.ne.s32.totalorder %s35, %s36
      %p50 = scmp.eq.s32.totalorder %s28, 1
      %p51 = por %p49, %p50
      %p53 = scmp.ne.s32.totalorder %s36, %s52
      %p54 = scmp.eq.s32.totalorder %s28, 0
      %p55 = por %p53, %p54
      %s57 = sadd.s32 %s56, 1
      %p60 = scmp.eq.s32.totalorder %s22, 1
      %p61 = scmp.ne.s32.totalorder %s56, %s58
      %p62 = scmp.eq.s32.totalorder %s22, 0
      %p63 = por %p61, %p62
      %p64 = scmp.ne.s32.totalorder %s56, %s58
      %p65 = scmp.eq.s32.totalorder %s27, 1
      %p66 = por %p64, %p65
      %p67 = scmp.ne.s32.totalorder %s58, %s59
      %p68 = scmp.eq.s32.totalorder %s27, 0
      %p69 = por %p67, %p68
      %p70 = scmp.ne.s32.totalorder %s58, %s59
      %p71 = scmp.eq.s32.totalorder %s28, 1
      %p72 = por %p70, %p71
      %p74 = scmp.ne.s32.totalorder %s59, %s73
      %p75 = scmp.eq.s32.totalorder %s28, 0
      %p76 = por %p74, %p75
      %s78 = sadd.s32 %s77, 1
      %p81 = scmp.eq.s32.totalorder %s22, 1
      %p82 = scmp.ne.s32.totalorder %s77, %s79
      %p83 = scmp.eq.s32.totalorder %s22, 0
      %p84 = por %p82, %p83
      %p85 = scmp.ne.s32.totalorder %s77, %s79
      %p86 = scmp.eq.s32.totalorder %s27, 1
      %p87 = por %p85, %p86
      %p88 = scmp.ne.s32.totalorder %s79, %s80
      %p89 = scmp.eq.s32.totalorder %s27, 0
      %p90 = por %p88, %p89
      %p91 = scmp.ne.s32.totalorder %s79, %s80
      %p92 = scmp.eq.s32.totalorder %s28, 1
      %p93 = por %p91, %p92
      %p95 = scmp.ne.s32.totalorder %s80, %s94
      %p96 = scmp.eq.s32.totalorder %s28, 0
      %p97 = por %p95, %p96
      %s98 = ssub.s32 %s22, %s29
      %p99 = scmp.eq.s32.totalorder %s98, 0
      %s101 = sadd.s32 %s100, 1
      %s102 = scalar_select %p99, %s100, %s101
      %p105 = pneg %p99
      %p106 = scmp.eq.s32.totalorder %s22, 1
      %p107 = por %p105, %p106
      %p108 = scmp.ne.s32.totalorder %s100, %s103
      %p109 = scmp.eq.s32.totalorder %s22, 0
      %p110 = por %p108, %p109
      %p111 = scmp.ne.s32.totalorder %s100, %s103
      %p112 = scmp.eq.s32.totalorder %s27, 1
      %p113 = por %p111, %p112
      %p114 = scmp.ne.s32.totalorder %s103, %s104
      %p115 = scmp.eq.s32.totalorder %s27, 0
      %p116 = por %p114, %p115
      %p117 = scmp.ne.s32.totalorder %s103, %s104
      %p118 = scmp.eq.s32.totalorder %s28, 1
      %p119 = por %p117, %p118
      %p121 = scmp.ne.s32.totalorder %s104, %s120
      %p122 = scmp.eq.s32.totalorder %s28, 0
      %p123 = por %p121, %p122
      %s124 = ssub.s32 %s22, %s29
      %p125 = scmp.eq.s32.totalorder %s124, 0
      %s127 = sadd.s32 %s126, 1
      %s128 = scalar_select %p125, %s126, %s127
      %p131 = pneg %p125
      %p132 = scmp.eq.s32.totalorder %s22, 1
      %p133 = por %p131, %p132
      %p134 = scmp.ne.s32.totalorder %s126, %s129
      %p135 = scmp.eq.s32.totalorder %s22, 0
      %p136 = por %p134, %p135
      %p137 = scmp.ne.s32.totalorder %s126, %s129
      %p138 = scmp.eq.s32.totalorder %s27, 1
      %p139 = por %p137, %p138
      %p140 = scmp.ne.s32.totalorder %s129, %s130
      %p141 = scmp.eq.s32.totalorder %s27, 0
      %p142 = por %p140, %p141
      %p143 = scmp.ne.s32.totalorder %s129, %s130
      %p144 = scmp.eq.s32.totalorder %s28, 1
      %p145 = por %p143, %p144
      %p147 = scmp.ne.s32.totalorder %s130, %s146
      %p148 = scmp.eq.s32.totalorder %s28, 0
      %p149 = por %p147, %p148
      %s150 = ssub.s32 %s22, %s29
      %p151 = scmp.eq.s32.totalorder %s150, 0
      %s153 = sadd.s32 %s152, 1
      %s154 = scalar_select %p151, %s152, %s153
      %p157 = pneg %p151
      %p158 = scmp.eq.s32.totalorder %s22, 1
      %p159 = por %p157, %p158
      %p160 = scmp.ne.s32.totalorder %s152, %s155
      %p161 = scmp.eq.s32.totalorder %s22, 0
      %p162 = por %p160, %p161
      %p163 = scmp.ne.s32.totalorder %s152, %s155
      %p164 = scmp.eq.s32.totalorder %s27, 1
      %p165 = por %p163, %p164
      %p166 = scmp.ne.s32.totalorder %s155, %s156
      %p167 = scmp.eq.s32.totalorder %s27, 0
      %p168 = por %p166, %p167
      %p169 = scmp.ne.s32.totalorder %s155, %s156
      %p170 = scmp.eq.s32.totalorder %s28, 1
      %p171 = por %p169, %p170
      %p173 = scmp.ne.s32.totalorder %s156, %s172
      %p174 = scmp.eq.s32.totalorder %s28, 0
      %p175 = por %p173, %p174
      %p176 = scmp.le.s32.totalorder 1, %s22
      %p177 = scmp.lt.s32.totalorder %s22, 3
      %p178 = pnand %p176, %p177
      %p179 = pneg %p178
      // Predicated region
      $region9: #{tpu_custom_call.1} parent=5 // pred_check
        _
      $region10: #{tpu_custom_call.1} parent=5 // pred_check_branch
        %181 = sbr.rel (%p178) target = $region12
      $region11: #{tpu_custom_call.1} parent=5 // pred_region
        %s182 = ssub.s32 %s22, 1
        // Predicated region
        $region13: #{tpu_custom_call.1} parent=11 // pred_check
          %p183 = pneg %p69
        $region14: #{tpu_custom_call.1} parent=11 // pred_check_branch
          %185 = sbr.rel (%p183) target = $region16
        $region15: #{tpu_custom_call.1} parent=11 // pred_region
          %s187 = ssub.s32 2048, 2048
          %188 = vsyncadd [#allocation6], %s187
          %s189 = sshll.u32 [#allocation5], 4
          %s190 = int_to_ptr.vmem [resolvable:$true] %s189
          %195 = dma.hbm_to_vmem [thread:$0]  %s1, 2048, %s190, [#allocation6], 128, 128, 8
        $region16: #{tpu_custom_call.1} parent=11 // pred_fallthru
          _
        // Predicated region
        $region17: #{tpu_custom_call.1} parent=11 // pred_check
          %p196 = pneg %p90
        $region18: #{tpu_custom_call.1} parent=11 // pred_check_branch
          %198 = sbr.rel (%p196) target = $region20
        $region19: #{tpu_custom_call.1} parent=11 // pred_region
          _
        $region20: #{tpu_custom_call.1} parent=11 // pred_fallthru
          _
      $region12: #{tpu_custom_call.1} parent=5 // pred_fallthru
        _
      %p199 = scmp.lt.s32.totalorder %s22, 2
      // Predicated region
      $region21: #{tpu_custom_call.1} parent=5 // pred_check
        %p200 = pneg %p199
      $region22: #{tpu_custom_call.1} parent=5 // pred_check_branch
        %202 = sbr.rel (%p200) target = $region24
      $region23: #{tpu_custom_call.1} parent=5 // pred_region
        // Predicated region
        $region25: #{tpu_custom_call.1} parent=23 // pred_check
          %p203 = pneg %p42
        $region26: #{tpu_custom_call.1} parent=23 // pred_check_branch
          %205 = sbr.rel (%p203) target = $region28
        $region27: #{tpu_custom_call.1} parent=23 // pred_region
          %s206 = sand.u32 %s32, 1
          %s207 = scalar_lea.sflag [#allocation3], %s206
          %s208 = sand.u32 %s32, 1
          %s209 = smul.addr %s208, 8
          %s210 = scalar_lea.vmem [#allocation2], %s209
          %s212 = ssub.s32 128, 128
          %213 = vsyncadd %s207, %s212
          %s214 = smul.addr %s22, 128
          %s215 = scalar_lea.hbm %s0, %s214
          %s217 = sshll.u32 %s210, 4
          %s218 = int_to_ptr.vmem [resolvable:$true] %s217
          %220 = dma.hbm_to_vmem [thread:$0]  %s215, 128, %s218, %s207
        $region28: #{tpu_custom_call.1} parent=23 // pred_fallthru
          _
      $region24: #{tpu_custom_call.1} parent=5 // pred_fallthru
        _
      %p221 = scmp.le.s32.totalorder 1, %s22
      %p222 = scmp.lt.s32.totalorder %s22, 3
      %p223 = pnand %p221, %p222
      %p224 = pneg %p223
      // Predicated region
      $region29: #{tpu_custom_call.1} parent=5 // pred_check
        _
      $region30: #{tpu_custom_call.1} parent=5 // pred_check_branch
        %226 = sbr.rel (%p223) target = $region32
      $region31: #{tpu_custom_call.1} parent=5 // pred_region
        %s227 = ssub.s32 %s22, 1
        %s228 = sand.u32 %s35, 1
        %s229 = scalar_lea.sflag [#allocation3], %s228
        %s230 = sand.u32 %s35, 1
        %s231 = smul.addr %s230, 8
        %s232 = scalar_lea.vmem [#allocation2], %s231
        // Predicated region
        $region33: #{tpu_custom_call.1} parent=31 // pred_check
          %p233 = pneg %p48
        $region34: #{tpu_custom_call.1} parent=31 // pred_check_branch
          %235 = sbr.rel (%p233) target = $region36
        $region35: #{tpu_custom_call.1} parent=31 // pred_region
          %236 = dma.done %s229, 128
        $region36: #{tpu_custom_call.1} parent=31 // pred_fallthru
          _
        // Predicated region
        $region37: #{tpu_custom_call.1} parent=31 // pred_check
          %p237 = pneg %p69
        $region38: #{tpu_custom_call.1} parent=31 // pred_check_branch
          %239 = sbr.rel (%p237) target = $region40
        $region39: #{tpu_custom_call.1} parent=31 // pred_region
          %240 = dma.done [#allocation6], 2048
        $region40: #{tpu_custom_call.1} parent=31 // pred_fallthru
          _
        %s241 = sand.u32 %s35, 1
        %s242 = scalar_lea.sflag [#allocation3], %s241
        %s243 = sand.u32 %s35, 1
        %s244 = smul.addr %s243, 8
        %s245 = scalar_lea.vmem [#allocation2], %s244
        %p246 = pneg %p48
        %p247 = pneg %p45
        %p248 = pneg %p69
        %p249 = pneg %p66
        %p250 = pneg %p90
        %p251 = pneg %p87
        %p252 = pneg %p116
        %p253 = pneg %p113
        %s254 = sand.u32 %s103, 1
        %s255 = scalar_lea.sflag [#allocation4], %s254
        %s256 = sand.u32 %s103, 1
        %s257 = smul.addr %s256, 8
        %s258 = scalar_lea.vmem [#allocation7], %s257
        %p259 = pneg %p142
        %p260 = pneg %p139
        %s261 = sand.u32 %s27, 1
        %s262 = scalar_lea.sflag [#allocation9], %s261
        %s263 = sand.u32 %s129, 1
        %s264 = scalar_lea.vmem [#allocation8], %s263
        %p265 = pneg %p168
        %p266 = pneg %p165
        %s267 = sand.u32 %s27, 1
        %s268 = scalar_lea.sflag [#allocation9], %s267
        %s269 = sand.u32 %s155, 1
        %s270 = scalar_lea.vmem [#allocation10], %s269
        %v271 = vld [vmem:[%s232] sm:$0xff]
        %v272 = vld [vmem:[#allocation5] sm:$0xff]
        %v273 = vld [vmem:[#allocation5 + $0x8] sm:$0xff]
        %v274 = vld [vmem:[#allocation5 + $0x10] sm:$0xff]
        %v275 = vld [vmem:[#allocation5 + $0x18] sm:$0xff]
        %v276 = vld [vmem:[#allocation5 + $0x20] sm:$0xff]
        %v277 = vld [vmem:[#allocation5 + $0x28] sm:$0xff]
        %v278 = vld [vmem:[#allocation5 + $0x30] sm:$0xff]
        %v279 = vld [vmem:[#allocation5 + $0x38] sm:$0xff]
        %v280 = vld [vmem:[#allocation5 + $0x40] sm:$0xff]
        %v281 = vld [vmem:[#allocation5 + $0x48] sm:$0xff]
        %v282 = vld [vmem:[#allocation5 + $0x50] sm:$0xff]
        %v283 = vld [vmem:[#allocation5 + $0x58] sm:$0xff]
        %v284 = vld [vmem:[#allocation5 + $0x60] sm:$0xff]
        %v285 = vld [vmem:[#allocation5 + $0x68] sm:$0xff]
        %v286 = vld [vmem:[#allocation5 + $0x70] sm:$0xff]
        %v287 = vld [vmem:[#allocation5 + $0x78] sm:$0xff]
        %v288 = vld [vmem:[%s2] sm:$0x1]
        %289 = vmatprep.subr.mxu0 0.0
        %290 = vmatpush1.xpose.msra.mxu0 %v272
        %291 = vmatprep.subr.mxu0 0.0
        %292 = vmatpush1.xpose.msra.mxu0 %v273
        %293 = vmatprep.subr.mxu0 0.0
        %294 = vmatpush1.xpose.msra.mxu0 %v274
        %295 = vmatprep.subr.mxu0 0.0
        %296 = vmatpush1.xpose.msra.mxu0 %v275
        %297 = vmatprep.subr.mxu0 0.0
        %298 = vmatpush1.xpose.msra.mxu0 %v276
        %299 = vmatprep.subr.mxu0 0.0
        %300 = vmatpush1.xpose.msra.mxu0 %v277
        %301 = vmatprep.subr.mxu0 0.0
        %302 = vmatpush1.xpose.msra.mxu0 %v278
        %303 = vmatprep.subr.mxu0 0.0
        %304 = vmatpush1.xpose.msra.mxu0 %v279
        %305 = vmatprep.subr.mxu0 0.0
        %306 = vmatpush1.xpose.msra.mxu0 %v280
        %307 = vmatprep.subr.mxu0 0.0
        %308 = vmatpush1.xpose.msra.mxu0 %v281
        %309 = vmatprep.subr.mxu0 0.0
        %310 = vmatpush1.xpose.msra.mxu0 %v282
        %311 = vmatprep.subr.mxu0 0.0
        %312 = vmatpush1.xpose.msra.mxu0 %v283
        %313 = vmatprep.subr.mxu0 0.0
        %314 = vmatpush1.xpose.msra.mxu0 %v284
        %315 = vmatprep.subr.mxu0 0.0
        %316 = vmatpush1.xpose.msra.mxu0 %v285
        %317 = vmatprep.subr.mxu0 0.0
        %318 = vmatpush1.xpose.msra.mxu0 %v286
        %319 = vmatprep.subr.mxu0 0.0
        %320 = vmatpush1.xpose.msra.mxu0 %v287
        %321 = vmatprep.subr.mxu0 0.0
        %322 = vmatpush1.xpose.msra.mxu0 0.0
        %323 = vmatprep.subr.mxu0 0.0
        %324 = vmatpush1.xpose.msra.mxu0 0.0
        %325 = vmatprep.subr.mxu0 0.0
        %326 = vmatpush1.xpose.msra.mxu0 0.0
        %327 = vmatprep.subr.mxu0 0.0
        %328 = vmatpush1.xpose.msra.mxu0 0.0
        %329 = vmatprep.subr.mxu0 0.0
        %330 = vmatpush1.xpose.msra.mxu0 0.0
        %331 = vmatprep.subr.mxu0 0.0
        %332 = vmatpush1.xpose.msra.mxu0 0.0
        %333 = vmatprep.subr.mxu0 0.0
        %334 = vmatpush1.xpose.msra.mxu0 0.0
        %335 = vmatprep.subr.mxu0 0.0
        %336 = vmatpush1.xpose.msra.mxu0 0.0
        %337 = vmatprep.subr.mxu0 0.0
        %338 = vmatpush1.xpose.msra.mxu0 0.0
        %339 = vmatprep.subr.mxu0 0.0
        %340 = vmatpush1.xpose.msra.mxu0 0.0
        %341 = vmatprep.subr.mxu0 0.0
        %342 = vmatpush1.xpose.msra.mxu0 0.0
        %343 = vmatprep.subr.mxu0 0.0
        %344 = vmatpush1.xpose.msra.mxu0 0.0
        %345 = vmatprep.subr.mxu0 0.0
        %346 = vmatpush1.xpose.msra.mxu0 0.0
        %347 = vmatprep.subr.mxu0 0.0
        %348 = vmatpush1.xpose.msra.mxu0 0.0
        %349 = vmatprep.subr.mxu0 0.0
        %350 = vmatpush1.xpose.msra.mxu0 0.0
        %351 = vmatprep.subr.mxu0 0.0
        %352 = vmatpush1.xpose.msra.mxu0 0.0
        %353 = vmatprep.mubr.f32.mxu0 0.0
        %354 = vmatmul.mubr.f32.gmra.mrb[0].mxu0 %v271
        %v355 = vpop.f32.mrb[0].mxu0
        %v356 = vadd.f32 0.0, %v355
        %v357 = vpop.f32.mrb[0].mxu0
        %358 = vdwg.mxu0
        %v360 = vlaneseq
        %v361 = vshrl.u32 %v360, 7
        %v362 = vsub.s32 0, %v361
        %v363 = vrot.slane %v288, %v362
        %v365 = vsub.f32 %v363, %v356
        %366 = vmin.xlane.f32.xlu0 %v365
        %v367 = vpop.xlane.xlu0 %366
        %v368 = vlaneseq
        %v369 = vand.u32 %v368, 127
        %vm370 = vcmp.eq.f32.partialorder %v365, %v367
        %v371 = vsel %vm370, %v369, 128
        %v372 = vand.u32 %v371, 65535
        %v373 = vshra.s32 %v371, 16
        %v374 = vcvt.s32.f32 %v372
        %v375 = vcvt.s32.f32 %v373
        %376 = vmin.xlane.f32.xlu0 %v375
        %v377 = vpop.xlane.xlu0 %376
        %vm378 = vcmp.eq.f32.partialorder %v375, %v377
        %v379 = vsel %vm378, %v374, inf
        %380 = vmin.xlane.f32.xlu0 %v379
        %v381 = vpop.xlane.xlu0 %380
        %v382 = vcvt.f32.s32 %v381
        %v383 = vcvt.f32.s32 %v377
        %v384 = vshll.u32 %v383, 16
        %v385 = vadd.s32 %v384, %v382
        %vm386 = vcmp.eq.s32.totalorder %v369, %v385
        %v387 = vcvt.s32.f32 %v369
        %v388 = vsel %vm386, 1, 0
        %v389 = vcvt.s32.f32 %v388
        %390 = vmatprep.subr.mxu0 0.0
        %391 = vmatpush1.xpose.msra.mxu0 %v389
        %392 = vmatprep.subr.mxu0 0.0
        %393 = vmatpush1.xpose.msra.mxu0 0.0
        %394 = vmatprep.subr.mxu0 0.0
        %395 = vmatpush1.xpose.msra.mxu0 0.0
        %396 = vmatprep.subr.mxu0 0.0
        %397 = vmatpush1.xpose.msra.mxu0 0.0
        %398 = vmatprep.subr.mxu0 0.0
        %399 = vmatpush1.xpose.msra.mxu0 0.0
        %400 = vmatprep.subr.mxu0 0.0
        %401 = vmatpush1.xpose.msra.mxu0 0.0
        %402 = vmatprep.subr.mxu0 0.0
        %403 = vmatpush1.xpose.msra.mxu0 0.0
        %404 = vmatprep.subr.mxu0 0.0
        %405 = vmatpush1.xpose.msra.mxu0 0.0
        %406 = vmatprep.subr.mxu0 0.0
        %407 = vmatpush1.xpose.msra.mxu0 0.0
        %408 = vmatprep.subr.mxu0 0.0
        %409 = vmatpush1.xpose.msra.mxu0 0.0
        %410 = vmatprep.subr.mxu0 0.0
        %411 = vmatpush1.xpose.msra.mxu0 0.0
        %412 = vmatprep.subr.mxu0 0.0
        %413 = vmatpush1.xpose.msra.mxu0 0.0
        %414 = vmatprep.subr.mxu0 0.0
        %415 = vmatpush1.xpose.msra.mxu0 0.0
        %416 = vmatprep.subr.mxu0 0.0
        %417 = vmatpush1.xpose.msra.mxu0 0.0
        %418 = vmatprep.subr.mxu0 0.0
        %419 = vmatpush1.xpose.msra.mxu0 0.0
        %420 = vmatprep.subr.mxu0 0.0
        %421 = vmatpush1.xpose.msra.mxu0 0.0
        %422 = vmatprep.subr.mxu0 0.0
        %423 = vmatpush1.xpose.msra.mxu0 0.0
        %424 = vmatprep.subr.mxu0 0.0
        %425 = vmatpush1.xpose.msra.mxu0 0.0
        %426 = vmatprep.subr.mxu0 0.0
        %427 = vmatpush1.xpose.msra.mxu0 0.0
        %428 = vmatprep.subr.mxu0 0.0
        %429 = vmatpush1.xpose.msra.mxu0 0.0
        %430 = vmatprep.subr.mxu0 0.0
        %431 = vmatpush1.xpose.msra.mxu0 0.0
        %432 = vmatprep.subr.mxu0 0.0
        %433 = vmatpush1.xpose.msra.mxu0 0.0
        %434 = vmatprep.subr.mxu0 0.0
        %435 = vmatpush1.xpose.msra.mxu0 0.0
        %436 = vmatprep.subr.mxu0 0.0
        %437 = vmatpush1.xpose.msra.mxu0 0.0
        %438 = vmatprep.subr.mxu0 0.0
        %439 = vmatpush1.xpose.msra.mxu0 0.0
        %440 = vmatprep.subr.mxu0 0.0
        %441 = vmatpush1.xpose.msra.mxu0 0.0
        %442 = vmatprep.subr.mxu0 0.0
        %443 = vmatpush1.xpose.msra.mxu0 0.0
        %444 = vmatprep.subr.mxu0 0.0
        %445 = vmatpush1.xpose.msra.mxu0 0.0
        %446 = vmatprep.subr.mxu0 0.0
        %447 = vmatpush1.xpose.msra.mxu0 0.0
        %448 = vmatprep.subr.mxu0 0.0
        %449 = vmatpush1.xpose.msra.mxu0 0.0
        %450 = vmatprep.subr.mxu0 0.0
        %451 = vmatpush1.xpose.msra.mxu0 0.0
        %452 = vmatprep.subr.mxu0 0.0
        %453 = vmatpush1.xpose.msra.mxu0 0.0
        %454 = vmatprep.mubr.f32.mxu0 0.0
        %455 = vmatmul.mubr.f32.gmra.mrb[0].mxu0 %v387
        %v456 = vpop.f32.mrb[0].mxu0
        %v457 = vadd.f32 0.5, %v456
        %v458 = vpop.f32.mrb[0].mxu0
        %459 = vdwg.mxu0
        %v460 = vcvt.f32.s32.to.zero.pseudo %v457
        %vm461 = vcmask 57344
        %462 = vst.msk [vmem:[%s264] sm:$0x1] %vm461, %v460
        %s463 = smul.u32 %s27, 8
        %v464 = vlaneseq
        %v465 = vshrl.u32 %v464, 7
        %v466 = vstv %s463
        %v467 = vadd.s32 %v466, %v465
        %vm468 = vcmp.lt.s32.totalorder %v467, 16
        %v469 = vsel %vm468, 1, 0
        %v470 = vcvt.s32.f32 %v469
        %471 = vmatprep.subr.mxu0 0.0
        %472 = vmatpush1.msra.mxu0 %v272
        %473 = vmatprep.subr.mxu0 0.0
        %474 = vmatpush1.msra.mxu0 %v273
        %475 = vmatprep.subr.mxu0 0.0
        %476 = vmatpush1.msra.mxu0 %v274
        %477 = vmatprep.subr.mxu0 0.0
        %478 = vmatpush1.msra.mxu0 %v275
        %479 = vmatprep.subr.mxu0 0.0
        %480 = vmatpush1.msra.mxu0 %v276
        %481 = vmatprep.subr.mxu0 0.0
        %482 = vmatpush1.msra.mxu0 %v277
        %483 = vmatprep.subr.mxu0 0.0
        %484 = vmatpush1.msra.mxu0 %v278
        %485 = vmatprep.subr.mxu0 0.0
        %486 = vmatpush1.msra.mxu0 %v279
        %487 = vmatprep.subr.mxu0 0.0
        %488 = vmatpush1.msra.mxu0 %v280
        %489 = vmatprep.subr.mxu0 0.0
        %490 = vmatpush1.msra.mxu0 %v281
        %491 = vmatprep.subr.mxu0 0.0
        %492 = vmatpush1.msra.mxu0 %v282
        %493 = vmatprep.subr.mxu0 0.0
        %494 = vmatpush1.msra.mxu0 %v283
        %495 = vmatprep.subr.mxu0 0.0
        %496 = vmatpush1.msra.mxu0 %v284
        %497 = vmatprep.subr.mxu0 0.0
        %498 = vmatpush1.msra.mxu0 %v285
        %499 = vmatprep.subr.mxu0 0.0
        %500 = vmatpush1.msra.mxu0 %v286
        %501 = vmatprep.subr.mxu0 0.0
        %502 = vmatpush1.msra.mxu0 %v287
        %503 = vmatprep.subr.mxu0 0.0
        %504 = vmatpush1.msra.mxu0 0.0
        %505 = vmatprep.subr.mxu0 0.0
        %506 = vmatpush1.msra.mxu0 0.0
        %507 = vmatprep.subr.mxu0 0.0
        %508 = vmatpush1.msra.mxu0 0.0
        %509 = vmatprep.subr.mxu0 0.0
        %510 = vmatpush1.msra.mxu0 0.0
        %511 = vmatprep.subr.mxu0 0.0
        %512 = vmatpush1.msra.mxu0 0.0
        %513 = vmatprep.subr.mxu0 0.0
        %514 = vmatpush1.msra.mxu0 0.0
        %515 = vmatprep.subr.mxu0 0.0
        %516 = vmatpush1.msra.mxu0 0.0
        %517 = vmatprep.subr.mxu0 0.0
        %518 = vmatpush1.msra.mxu0 0.0
        %519 = vmatprep.subr.mxu0 0.0
        %520 = vmatpush1.msra.mxu0 0.0
        %521 = vmatprep.subr.mxu0 0.0
        %522 = vmatpush1.msra.mxu0 0.0
        %523 = vmatprep.subr.mxu0 0.0
        %524 = vmatpush1.msra.mxu0 0.0
        %525 = vmatprep.subr.mxu0 0.0
        %526 = vmatpush1.msra.mxu0 0.0
        %527 = vmatprep.subr.mxu0 0.0
        %528 = vmatpush1.msra.mxu0 0.0
        %529 = vmatprep.subr.mxu0 0.0
        %530 = vmatpush1.msra.mxu0 0.0
        %531 = vmatprep.subr.mxu0 0.0
        %532 = vmatpush1.msra.mxu0 0.0
        %533 = vmatprep.subr.mxu0 0.0
        %534 = vmatpush1.msra.mxu0 0.0
        %535 = vmatprep.mubr.f32.mxu0 0.0
        %536 = vmatmul.mubr.f32.gmra.mrb[0].mxu0 %v389
        %v537 = vpop.f32.mrb[0].mxu0
        %v538 = vadd.f32 0.0, %v537
        %v539 = vpop.f32.mrb[0].mxu0
        %540 = vdwg.mxu0
        %541 = vst [vmem:[%s258] sm:$0xff] %v538
        %v542 = vsub.f32 %v538, %v271
        %v543 = vmul.f32 %v542, %v470
        %v544 = vmul.f32 %v543, %v543
        %545 = vadd.xlane.f32.xlu0 %v544
        %v546 = vpop.xlane.xlu0 %545
        %v547 = vrot.slane %v546, 4
        %v548 = vadd.f32 %v546, %v547
        %v549 = vrot.slane %v548, 2
        %v550 = vadd.f32 %v548, %v549
        %v551 = vrot.slane %v550, 1
        %v552 = vadd.f32 %v550, %v551
        %553 = vst [vmem:[%s270] sm:$0x1] %v552
        %s554 = sand.u32 %s103, 1
        %s555 = scalar_lea.sflag [#allocation4], %s554
        %s556 = sand.u32 %s103, 1
        %s557 = smul.addr %s556, 8
        %s558 = scalar_lea.vmem [#allocation7], %s557
        %s559 = sand.u32 %s27, 1
        %s560 = scalar_lea.sflag [#allocation9], %s559
        %s561 = sand.u32 %s129, 1
        %s562 = scalar_lea.vmem [#allocation8], %s561
        %s563 = sand.u32 %s27, 1
        %s564 = scalar_lea.sflag [#allocation9], %s563
        %s565 = sand.u32 %s155, 1
        %s566 = scalar_lea.vmem [#allocation10], %s565
        // Predicated region
        $region41: #{tpu_custom_call.1} parent=31 // pred_check
          %p567 = pneg %p113
        $region42: #{tpu_custom_call.1} parent=31 // pred_check_branch
          %569 = sbr.rel (%p567) target = $region44
        $region43: #{tpu_custom_call.1} parent=31 // pred_region
          %s571 = ssub.s32 128, 128
          %572 = vsyncadd %s555, %s571
          %s573 = smul.addr %s27, 128
          %s574 = scalar_lea.hbm %s3, %s573
          %s576 = sshll.u32 %s558, 4
          %s577 = int_to_ptr.vmem [resolvable:$true] %s576
          %579 = dma.vmem_to_hbm [thread:$0]  %s577, 128, %s574, %s555
        $region44: #{tpu_custom_call.1} parent=31 // pred_fallthru
          _
        // Predicated region
        $region45: #{tpu_custom_call.1} parent=31 // pred_check
          %p580 = pneg %p139
        $region46: #{tpu_custom_call.1} parent=31 // pred_check_branch
          %582 = sbr.rel (%p580) target = $region48
        $region47: #{tpu_custom_call.1} parent=31 // pred_region
          %s584 = ssub.s32 16, 16
          %585 = vsyncadd %s560, %s584
          %s586 = smul.addr %s27, 16
          %s587 = scalar_lea.hbm %s4, %s586
          %s589 = sshll.u32 %s562, 4
          %s590 = int_to_ptr.vmem [resolvable:$true] %s589
          %592 = dma.vmem_to_hbm [thread:$0]  %s590, 16, %s587, %s560
        $region48: #{tpu_custom_call.1} parent=31 // pred_fallthru
          _
        // Predicated region
        $region49: #{tpu_custom_call.1} parent=31 // pred_check
          %p593 = pneg %p165
        $region50: #{tpu_custom_call.1} parent=31 // pred_check_branch
          %595 = sbr.rel (%p593) target = $region52
        $region51: #{tpu_custom_call.1} parent=31 // pred_region
          %s597 = ssub.s32 16, 16
          %598 = vsyncadd %s564, %s597
          %s599 = smul.addr %s27, 16
          %s600 = scalar_lea.hbm %s5, %s599
          %s602 = sshll.u32 %s566, 4
          %s603 = int_to_ptr.vmem [resolvable:$true] %s602
          %605 = dma.vmem_to_hbm [thread:$0]  %s603, 16, %s600, %s564
        $region52: #{tpu_custom_call.1} parent=31 // pred_fallthru
          _
      $region32: #{tpu_custom_call.1} parent=5 // pred_fallthru
        _
      %p606 = scmp.le.s32.totalorder 2, %s22
      // Predicated region
      $region53: #{tpu_custom_call.1} parent=5 // pred_check
        %p607 = pneg %p606
      $region54: #{tpu_custom_call.1} parent=5 // pred_check_branch
        %609 = sbr.rel (%p607) target = $region56
      $region55: #{tpu_custom_call.1} parent=5 // pred_region
        %s610 = ssub.s32 %s22, 2
        // Predicated region
        $region57: #{tpu_custom_call.1} parent=55 // pred_check
          %p611 = pneg %p119
        $region58: #{tpu_custom_call.1} parent=55 // pred_check_branch
          %613 = sbr.rel (%p611) target = $region60
        $region59: #{tpu_custom_call.1} parent=55 // pred_region
          %s614 = sand.u32 %s104, 1
          %s615 = scalar_lea.sflag [#allocation4], %s614
          %s616 = sand.u32 %s104, 1
          %s617 = smul.addr %s616, 8
          %s618 = scalar_lea.vmem [#allocation7], %s617
          %619 = dma.done %s615, 128
        $region60: #{tpu_custom_call.1} parent=55 // pred_fallthru
          _
        // Predicated region
        $region61: #{tpu_custom_call.1} parent=55 // pred_check
          %p620 = pneg %p145
        $region62: #{tpu_custom_call.1} parent=55 // pred_check_branch
          %622 = sbr.rel (%p620) target = $region64
        $region63: #{tpu_custom_call.1} parent=55 // pred_region
          %s623 = sand.u32 %s28, 1
          %s624 = scalar_lea.sflag [#allocation9], %s623
          %s625 = sand.u32 %s130, 1
          %s626 = scalar_lea.vmem [#allocation8], %s625
          %627 = dma.done %s624, 16
        $region64: #{tpu_custom_call.1} parent=55 // pred_fallthru
          _
        // Predicated region
        $region65: #{tpu_custom_call.1} parent=55 // pred_check
          %p628 = pneg %p171
        $region66: #{tpu_custom_call.1} parent=55 // pred_check_branch
          %630 = sbr.rel (%p628) target = $region68
        $region67: #{tpu_custom_call.1} parent=55 // pred_region
          %s631 = sand.u32 %s28, 1
          %s632 = scalar_lea.sflag [#allocation9], %s631
          %s633 = sand.u32 %s156, 1
          %s634 = scalar_lea.vmem [#allocation10], %s633
          %635 = dma.done %s632, 16
        $region68: #{tpu_custom_call.1} parent=55 // pred_fallthru
          _
      $region56: #{tpu_custom_call.1} parent=5 // pred_fallthru
        _
    $region6: #{tpu_custom_call.1} parent=1 // loop_footer
      %s26 = sadd.s32 1, %s22
    $region7: #{tpu_custom_call.1} parent=1 // loop_footer_branch
      %21 = sbr.rel target = $region3
    $region8: #{tpu_custom_call.1} parent=1 // loop_exit
      _
    %636 = vsyncpa [#allocation3], 1
    %s637 = scalar_lea.sflag [#allocation3], 1
    %638 = vsyncpa %s637, 1
    %639 = vsyncpa [#allocation6], 1
    %640 = vsyncpa [#allocation4], 1
    %s641 = scalar_lea.sflag [#allocation4], 1
    %642 = vsyncpa %s641, 1
    %643 = vsyncpa [#allocation9], 1
    %s644 = scalar_lea.sflag [#allocation9], 1
    %645 = vsyncpa %s644, 1

</llo_original>
